<compile_context>
chip_gen: v7x
topology: tpu7x:2x2x1
jax: 0.10.0
libtpu: 0.0.40
codegen_flags: <defaults>
</compile_context>

<pallas_src>
import functools

import jax
import jax.numpy as jnp
from jax.experimental import pallas as pl
from jax.experimental.pallas import tpu as pltpu

SLOPE = 0.01                       # default slope from the PyTorch module
_LANE_CHOICES = (512, 384, 256, 128)
_TARGET_BLOCK_BYTES = 4 << 20      # ~4 MiB tiles; in+out double buffered ~16 MiB
_VMEM_CAP_BYTES = 48 << 20         # stays under v7x's 64 MiB physical VMEM
_SMALL_BYTES = 1 << 20             # below ~1 MiB, XLA fusion beats kernel launch


def _sublanes_for(dtype) -> int:
    # f32 -> 8, bf16/f16 -> 16, int8/fp8 -> 32 (sub-32-bit packs along sublanes).
    return max(8, 32 // jnp.dtype(dtype).itemsize)


def _hard_leaky_sigmoid_math(x, slope):
    # Clamp form of the piecewise leak — numerically identical to the
    # where/where reference:
    #   x <= -1 : f = slope*(x+1) - 1
    #   |x| <= 1: f = x
    #   x  >  1 : f = slope*(x-1) + 1
    # then: out = max(0.5*(f+1), slope*x)
    c = jnp.clip(x, -1.0, 1.0)
    f = c + slope * (x - c)
    return jnp.maximum(0.5 * (f + 1.0), slope * x)


def _hard_leaky_sigmoid_kernel(x_ref, o_ref, *, slope):
    o_ref[...] = _hard_leaky_sigmoid_math(x_ref[...], slope)


def hard_leaky_sigmoid(x, slope=SLOPE, *, force_pallas=False,
                       target_block_bytes=_TARGET_BLOCK_BYTES):
    """Elementwise HardLeakySigmoid, matching the PyTorch forward exactly."""
    orig_shape = x.shape
    n = x.size
    if n == 0:
        return x

    dtype = x.dtype
    itemsize = jnp.dtype(dtype).itemsize

    # Small-input fast path: pallas_call launch cost dominates; XLA fuses the
    # 7-op elementwise chain optimally.
    if not force_pallas and n * itemsize < _SMALL_BYTES:
        return _hard_leaky_sigmoid_math(x, slope)

    # Pick a lane-dense width that divides n exactly -> no pad/slice HBM passes.
    lanes = next((w for w in _LANE_CHOICES if n % w == 0), None)
    if lanes is None:
        # Unalignable ragged size: a pad + slice round trip would roughly 3x the
        # HBM traffic of this bandwidth-bound op, so the fused-XLA elementwise
        # path (already at the roofline) is the faster choice.
        return _hard_leaky_sigmoid_math(x, slope)

    rows = n // lanes
    sublanes = _sublanes_for(dtype)

    # Big, sublane-aligned tiles. No row padding: the grid uses cdiv and Pallas
    # handles the partial last block (block_shape stays (8k, 128k)-aligned).
    tile_rows = max(target_block_bytes // (lanes * itemsize), sublanes)
    tile_rows = (tile_rows // sublanes) * sublanes
    if rows <= tile_rows:
        # Single block covering the whole slab; block == full array dim is
        # always legal regardless of sublane divisibility.
        tile_rows = rows

    grid = (pl.cdiv(rows, tile_rows),)
    tile_bytes = tile_rows * lanes * itemsize
    # in + out, double-buffered, plus headroom. Above v5e's 16 MiB default
    # scoped limit when tiles are large, below v7x's 64 MiB physical VMEM.
    vmem_limit = int(min(4 * tile_bytes + (4 << 20), _VMEM_CAP_BYTES))

    x2d = x.reshape(rows, lanes)

    out2d = pl.pallas_call(
        functools.partial(_hard_leaky_sigmoid_kernel, slope=slope),
        out_shape=jax.ShapeDtypeStruct((rows, lanes), dtype),
        grid_spec=pltpu.PrefetchScalarGridSpec(
            num_scalar_prefetch=0,
            grid=grid,
            in_specs=[pl.BlockSpec((tile_rows, lanes), lambda i: (i, 0))],
            out_specs=pl.BlockSpec((tile_rows, lanes), lambda i: (i, 0)),
        ),
        compiler_params=pltpu.CompilerParams(
            # Megacore dispatch shards this axis across the 2 TCs on v7x;
            # no-op (but harmless) on single-TC v5e/v6e.
            dimension_semantics=("parallel",),
            vmem_limit_bytes=vmem_limit,
        ),
        cost_estimate=pl.CostEstimate(
            flops=7 * n, transcendentals=0, bytes_accessed=2 * n * itemsize),
    )(x2d)

    return out2d.reshape(orig_shape)


def _reference(x, slope=SLOPE):
    f = jnp.where(
        x <= -1.0,
        slope * (x + 1.0) - 1.0,
        jnp.where(x > 1.0, slope * (x - 1.0) + 1.0, x),
    )
    return jnp.maximum(0.5 * (f + 1.0), slope * x)


if __name__ == "__main__":
    key = jax.random.PRNGKey(0)

    # NCHW-style activation map: (batch=2, C=4, H=16, W=16). Force the Pallas
    # path so the kernel itself is exercised even at this small size.
    x = jax.random.normal(key, (2, 4, 16, 16), dtype=jnp.float32) * 3.0
    ref = _reference(x)
    out = jax.block_until_ready(hard_leaky_sigmoid(x, force_pallas=True))
    assert out.shape == x.shape and out.dtype == x.dtype
    assert jnp.allclose(out, ref, atol=1e-6, rtol=1e-6), "mismatch vs reference"

    # Default dispatch at the same shape hits the small-input fast path.
    out_fast = jax.block_until_ready(hard_leaky_sigmoid(x))
    assert jnp.allclose(out_fast, ref, atol=1e-6, rtol=1e-6), "fast-path mismatch"

    # Lane-aligned size whose row count is NOT a multiple of tile_rows:
    # exercises the partial-last-block path (no pad/slice anywhere).
    x2 = jax.random.normal(jax.random.PRNGKey(1), (2, 4, 36, 16),
                           dtype=jnp.float32) * 3.0   # 4608 = 9 rows x 512 lanes
    out2 = jax.block_until_ready(
        hard_leaky_sigmoid(x2, force_pallas=True, target_block_bytes=1))
    assert out2.shape == x2.shape and out2.dtype == x2.dtype
    assert jnp.allclose(out2, _reference(x2), atol=1e-6, rtol=1e-6), \
        "mismatch vs reference (partial block)"

    # Ragged size (105 elements, not a multiple of 128): fused-XLA fallback.
    x3 = jax.random.normal(jax.random.PRNGKey(2), (3, 5, 7), dtype=jnp.float32) * 3.0
    out3 = jax.block_until_ready(hard_leaky_sigmoid(x3))
    assert out3.shape == x3.shape and out3.dtype == x3.dtype
    assert jnp.allclose(out3, _reference(x3), atol=1e-6, rtol=1e-6), \
        "mismatch vs reference (ragged)"

    print("KERNEL_OK")
</pallas_src>

<mosaic_0001>
module attributes {stable_mosaic.version = 11 : i64} {
  func.func @_hard_leaky_sigmoid_kernel(%arg0: i32, %arg1: memref<4x512xf32, #tpu.memory_space<vmem>>, %arg2: memref<4x512xf32, #tpu.memory_space<vmem>>) attributes {dimension_semantics = [#tpu.dimension_semantics<parallel>], iteration_bounds = array<i64: 1>, scalar_prefetch = 0 : i64, scratch_operands = 0 : i64, tpu.core_type = #tpu.core_type<tc>, window_params = [{transform_indices = @transform_0, window_bounds = array<i64: 4, 512>}, {transform_indices = @transform_1, window_bounds = array<i64: 4, 512>}]} {
    %c0 = arith.constant 0 : index
    %c0_0 = arith.constant 0 : index
    %0 = vector.load %arg1[%c0, %c0_0] : memref<4x512xf32, #tpu.memory_space<vmem>>, vector<4x512xf32>
    %cst = arith.constant -1.000000e+00 : f32
    %cst_1 = arith.constant 1.000000e+00 : f32
    %1 = vector.broadcast %cst : f32 to vector<4x512xf32>
    %2 = arith.maximumf %1, %0 : vector<4x512xf32>
    %3 = vector.broadcast %cst_1 : f32 to vector<4x512xf32>
    %4 = arith.minimumf %3, %2 : vector<4x512xf32>
    %5 = arith.subf %0, %4 : vector<4x512xf32>
    %cst_2 = arith.constant 0.00999999977 : f32
    %6 = vector.broadcast %cst_2 : f32 to vector<4x512xf32>
    %7 = arith.mulf %6, %5 : vector<4x512xf32>
    %8 = arith.addf %4, %7 : vector<4x512xf32>
    %cst_3 = arith.constant 1.000000e+00 : f32
    %9 = vector.broadcast %cst_3 : f32 to vector<4x512xf32>
    %10 = arith.addf %8, %9 : vector<4x512xf32>
    %cst_4 = arith.constant 5.000000e-01 : f32
    %11 = vector.broadcast %cst_4 : f32 to vector<4x512xf32>
    %12 = arith.mulf %11, %10 : vector<4x512xf32>
    %cst_5 = arith.constant 0.00999999977 : f32
    %13 = vector.broadcast %cst_5 : f32 to vector<4x512xf32>
    %14 = arith.mulf %13, %0 : vector<4x512xf32>
    %15 = arith.maximumf %12, %14 : vector<4x512xf32>
    %c0_6 = arith.constant 0 : index
    %c0_7 = arith.constant 0 : index
    %16 = vector.load %arg2[%c0_6, %c0_7] : memref<4x512xf32, #tpu.memory_space<vmem>>, vector<4x512xf32>
    tpu.vector_store %arg2[%c0_6, %c0_7], %15 {strides = array<i32>} : memref<4x512xf32, #tpu.memory_space<vmem>>, vector<4x512xf32>,
    return
  }
  func.func @transform_0(%arg0: i32) -> (i32, i32) {
    %c0_i32 = arith.constant 0 : i32
    %c0_i32_0 = arith.constant 0 : i32
    return %arg0, %c0_i32 : i32, i32
  }
  func.func @transform_1(%arg0: i32) -> (i32, i32) {
    %c0_i32 = arith.constant 0 : i32
    %c0_i32_0 = arith.constant 0 : i32
    return %arg0, %c0_i32 : i32, i32
  }
}

</mosaic_0001>

<llo_original>
// kernel: tpu_custom_call.1
$region0: #{tpu_custom_call.1}
  #allocation0 [shape = 'u32[]', space=smem, size = 0x4, offset = 0x4, fixed_abs, tag = 'smem constant byte address 0x4 - core index']
  #allocation1 [shape = 'u32[144,128]{1,0:T(1,128)}', space=vmem, size = 0x12000, scoped, tag = 'internal scratch']
  %s0 = inlined_call_operand.hbm [shape: f32[4,512], index: 0, kind: input, shape index: {}]
  %s1 = inlined_call_operand.hbm [shape: f32[4,512], index: 1, kind: output, shape index: {}]
  %s2 = sld [smem:[#allocation0]]
  $region18: #{tpu_custom_call.1} parent=0
    _
  %s4 = ssub.s32 1, %s2
  %s5 = scalar_select 0, %s4, %s2
  $region1: #{tpu_custom_call.1} parent=0
    #allocation2 [shape = 'u8[8192]{0}', space=vmem, size = 0x2000, scoped, tag = 'input window, operand 0, single buffered']
    #allocation3 [shape = 's32[1]{0}', space=sflag, size = 0x4, scoped, tag = 'scoped memory for tpu_custom_call.1']
    #allocation4 [shape = 's32[1]{0}', space=sflag, size = 0x4, scoped, tag = 'scoped memory for tpu_custom_call.1']
    #allocation5 [shape = 'u8[8192]{0}', space=vmem, size = 0x2000, scoped, tag = 'output window, operand 0, single buffered']
    %6 = vsyncpa [#allocation3], 0
    %7 = vsyncpa [#allocation4], 0
    // Predicated region
    $region2: #{tpu_custom_call.1} parent=1 // pred_check
      _
    $region3: #{tpu_custom_call.1} parent=1 // pred_check_branch
      %9 = sbr.rel (0) target = $region5
    $region4: #{tpu_custom_call.1} parent=1 // pred_region
      %s11 = ssub.s32 256, 256
      %12 = vsyncadd [#allocation3], %s11
      %s14 = sshll.u32 [#allocation2], 4
      %s15 = int_to_ptr.vmem [resolvable:$true] %s14
      %17 = dma.hbm_to_vmem [thread:$0]  %s0, 256, %s15, [#allocation3]
    $region5: #{tpu_custom_call.1} parent=1 // pred_fallthru
      _
    // Predicated region
    $region6: #{tpu_custom_call.1} parent=1 // pred_check
      _
    $region7: #{tpu_custom_call.1} parent=1 // pred_check_branch
      %19 = sbr.rel (0) target = $region9
    $region8: #{tpu_custom_call.1} parent=1 // pred_region
      %20 = dma.done [#allocation3], 256
    $region9: #{tpu_custom_call.1} parent=1 // pred_fallthru
      _
    %v21 = vld [vmem:[#allocation2] sm:$0xff]
    %v22 = vld [vmem:[#allocation2 + $0x8] sm:$0xff]
    %v23 = vmax.f32 %v21, -1.0
    %v24 = vmax.f32 %v22, -1.0
    %v25 = vmin.f32 %v23, 1.0
    %v26 = vmin.f32 %v24, 1.0
    %v27 = vsub.f32 %v21, %v25
    %v28 = vsub.f32 %v22, %v26
    %v29 = vmul.f32 %v27, 0.01
    %v30 = vmul.f32 %v28, 0.01
    %v31 = vadd.f32 %v25, %v29
    %v32 = vadd.f32 %v26, %v30
    %v33 = vadd.f32 %v31, 1.0
    %v34 = vadd.f32 %v32, 1.0
    %v35 = vmul.f32 %v33, 0.5
    %v36 = vmul.f32 %v34, 0.5
    %v37 = vmul.f32 %v21, 0.01
    %v38 = vmul.f32 %v22, 0.01
    %v39 = vmax.f32 %v35, %v37
    %v40 = vmax.f32 %v36, %v38
    %41 = vst [vmem:[#allocation5] sm:$0xff] %v39
    %42 = vst [vmem:[#allocation5 + $0x8] sm:$0xff] %v40
    // Predicated region
    $region10: #{tpu_custom_call.1} parent=1 // pred_check
      _
    $region11: #{tpu_custom_call.1} parent=1 // pred_check_branch
      %44 = sbr.rel (0) target = $region13
    $region12: #{tpu_custom_call.1} parent=1 // pred_region
      %s46 = ssub.s32 256, 256
      %47 = vsyncadd [#allocation4], %s46
      %s49 = sshll.u32 [#allocation5], 4
      %s50 = int_to_ptr.vmem [resolvable:$true] %s49
      %52 = dma.vmem_to_hbm [thread:$0]  %s50, 256, %s1, [#allocation4]
    $region13: #{tpu_custom_call.1} parent=1 // pred_fallthru
      _
    // Predicated region
    $region14: #{tpu_custom_call.1} parent=1 // pred_check
      _
    $region15: #{tpu_custom_call.1} parent=1 // pred_check_branch
      %54 = sbr.rel (0) target = $region17
    $region16: #{tpu_custom_call.1} parent=1 // pred_region
      %55 = dma.done [#allocation4], 256
    $region17: #{tpu_custom_call.1} parent=1 // pred_fallthru
      _
    %56 = vsyncpa [#allocation3], 1
    %57 = vsyncpa [#allocation4], 1

</llo_original>
